<compile_context>
chip_gen: v5e
topology: v5e:2x2
jax: 0.10.0
libtpu: 0.0.40
codegen_flags: <defaults>
</compile_context>

<pallas_src>
import functools

import numpy as np

import jax
import jax.numpy as jnp
from jax import lax
from jax.experimental import pallas as pl
from jax.experimental.pallas import tpu as pltpu


# dot_general dimension numbers:
_NT = (((1,), (1,)), ((), ()))   # contract last dims:  A[M,K] . B[N,K] -> [M,N]
_TN = (((0,), (0,)), ((), ()))   # contract first dims: A[K,M] . B[K,N] -> [M,N]


def _softplus(x, sp_dtype):
    """PyTorch nn.Softplus(beta=1, threshold=20)."""
    if np.dtype(sp_dtype) == np.dtype(np.float32):
        xf = x.astype(jnp.float32)
        # For x > 20 the select returns x; an inf in the discarded branch of the
        # select is harmless (never NaN), so no clamp is needed.
        return jnp.where(xf > 20.0, xf, jnp.log1p(jnp.exp(xf)))
    # bf16 path (v6e/v7x: bf16-capable EUP/VPU halves transcendental work).
    xs = x.astype(sp_dtype)
    return jnp.where(xs > 20.0, xs, jnp.log(1.0 + jnp.exp(xs)))


def odenet_kernel(x_ref, w1_ref, b1_ref, w2_ref, b2_ref, w3t_ref, b3_ref,
                  o_ref, *, sp_dtype):
    cd = w1_ref.dtype                       # matmul operand dtype (bf16 or f32)
    x = x_ref[...]                          # [tb, 3] f32, natural [batch, feat]
    x0, x1, x2 = x[:, 0:1], x[:, 1:2], x[:, 2:3]

    # Augmentation products in f32; only matmul operands are cast to `cd`.
    xc = x.astype(cd)
    p01 = (x0 * x1).astype(cd)
    p12 = (x1 * x2).astype(cd)
    p02 = (x0 * x2).astype(cd)

    w1 = w1_ref[...]                        # [64, 6]

    # Layer 1 bridges the natural [tb, F] layout into the lane-dense [64, tb]
    # compute layout using NT-form contractions (over the feature dim), so no
    # standalone transpose / unaligned lane concat is needed.  The three
    # augmentation columns fold in as K=1 outer-product matmuls.
    h = lax.dot_general(w1[:, 0:3], xc, _NT, preferred_element_type=jnp.float32)
    h = h + lax.dot_general(w1[:, 3:4], p01, _NT, preferred_element_type=jnp.float32)
    h = h + lax.dot_general(w1[:, 4:5], p12, _NT, preferred_element_type=jnp.float32)
    h = h + lax.dot_general(w1[:, 5:6], p02, _NT, preferred_element_type=jnp.float32)
    h = h + b1_ref[...]                     # [64, tb] f32 (bias in f32)
    h = _softplus(h, sp_dtype)

    h = jnp.dot(w2_ref[...], h.astype(cd),
                preferred_element_type=jnp.float32) + b2_ref[...]
    h = _softplus(h, sp_dtype)

    # Layer 3 bridges back to the natural [tb, 3] output layout with a TN-form
    # contraction against the pre-transposed last-layer weight [64, 3].
    o = lax.dot_general(h.astype(cd), w3t_ref[...], _TN,
                        preferred_element_type=jnp.float32)   # [tb, 3]
    o_ref[...] = (o + b3_ref[...]).astype(o_ref.dtype)


def _bf16_transcendentals_ok():
    """bf16 EUP/VPU exists on v6e/v7x; keep softplus in f32 on older gens."""
    try:
        kind = jax.devices()[0].device_kind.lower()
    except Exception:
        return False
    return not any(tag in kind for tag in ("v2", "v3", "v4", "v5"))


def _round_up(a, m):
    return (a + m - 1) // m * m


def odenet_forward(t_span, x, params, *, tile_b=4096,
                   compute_dtype=jnp.bfloat16, softplus_dtype=None):
    """ODENet forward. `params` are in PyTorch layout: W [out, in], b [out]."""
    del t_span                               # accepted but unused (as in PyTorch)
    w1, b1, w2, b2, w3, b3 = params
    B, F = x.shape
    assert F == 3

    cd = np.dtype(compute_dtype)
    if softplus_dtype is None:
        sp_dtype = (cd if (cd == np.dtype(jnp.bfloat16) and _bf16_transcendentals_ok())
                    else np.dtype(np.float32))
    else:
        sp_dtype = np.dtype(softplus_dtype)

    # Batch tiling: tiles up to `tile_b` columns; once B > 128 use an even number
    # of grid steps (>= 2) so v7x's two TensorCores get balanced shards; pad the
    # batch only to the 128-lane granularity implied by that split.
    LANE = 128
    if B <= LANE:
        n_steps, tb = 1, LANE
    else:
        n_steps = max(2, -(-B // tile_b))
        n_steps += n_steps % 2
        tb = _round_up(-(-B // n_steps), LANE)
    Bp = n_steps * tb

    xf = x.astype(jnp.float32)
    if Bp != B:
        # Pad rows just run softplus(bias) and produce finite garbage that is
        # sliced off below.
        xf = jnp.pad(xf, ((0, Bp - B), (0, 0)))

    w1c = w1.astype(cd)
    w2c = w2.astype(cd)
    w3t = w3.T.astype(cd)                    # [64, 3] tiny one-time weight transpose
    b1c = b1.reshape(64, 1).astype(jnp.float32)
    b2c = b2.reshape(64, 1).astype(jnp.float32)
    b3c = b3.reshape(1, 3).astype(jnp.float32)

    out = pl.pallas_call(
        functools.partial(odenet_kernel, sp_dtype=sp_dtype),
        out_shape=jax.ShapeDtypeStruct((Bp, 3), jnp.float32),
        grid=(n_steps,),
        in_specs=[
            pl.BlockSpec((tb, 3),  lambda i: (i, 0)),   # x tile, natural layout
            pl.BlockSpec((64, 6),  lambda i: (0, 0)),   # W1 (VMEM-resident)
            pl.BlockSpec((64, 1),  lambda i: (0, 0)),   # b1
            pl.BlockSpec((64, 64), lambda i: (0, 0)),   # W2
            pl.BlockSpec((64, 1),  lambda i: (0, 0)),   # b2
            pl.BlockSpec((64, 3),  lambda i: (0, 0)),   # W3^T
            pl.BlockSpec((1, 3),   lambda i: (0, 0)),   # b3
        ],
        out_specs=pl.BlockSpec((tb, 3), lambda i: (i, 0)),
        compiler_params=pltpu.CompilerParams(
            dimension_semantics=("parallel",)),
    )(xf, w1c, b1c, w2c, b2c, w3t, b3c)

    return out if Bp == B else out[:B]


def init_params(key):
    """PyTorch-Linear-style init: U(-1/sqrt(fan_in), 1/sqrt(fan_in)); torch layout."""
    def linear(k, fan_in, fan_out):
        kw, kb = jax.random.split(k)
        bound = 1.0 / jnp.sqrt(float(fan_in))
        w = jax.random.uniform(kw, (fan_out, fan_in), jnp.float32, -bound, bound)
        b = jax.random.uniform(kb, (fan_out,), jnp.float32, -bound, bound)
        return w, b

    k1, k2, k3 = jax.random.split(key, 3)
    w1, b1 = linear(k1, 6, 64)
    w2, b2 = linear(k2, 64, 64)
    w3, b3 = linear(k3, 64, 3)
    return (w1, b1, w2, b2, w3, b3)


def _softplus_ref(x):
    return jnp.where(x > 20.0, x, jnp.log1p(jnp.exp(jnp.minimum(x, 20.0))))


def odenet_reference(x, params):
    """Pure-JAX f32 reference mirroring the PyTorch forward (2-D path)."""
    w1, b1, w2, b2, w3, b3 = params
    x0, x1, x2 = x[:, 0:1], x[:, 1:2], x[:, 2:3]
    xa = jnp.concatenate([x, x0 * x1, x1 * x2, x0 * x2], axis=-1)
    h = _softplus_ref(xa @ w1.T + b1)
    h = _softplus_ref(h @ w2.T + b2)
    return h @ w3.T + b3


if __name__ == "__main__":
    key = jax.random.PRNGKey(0)
    k_x1, k_x2, k_p = jax.random.split(key, 3)
    params = init_params(k_p)
    t_span = jnp.linspace(0.0, 1.0, 8, dtype=jnp.float32)   # unused by the model

    # 1) Small batch: single 128-wide tile, default bf16 matmul path.
    x_small = jax.random.normal(k_x1, (32, 3), dtype=jnp.float32)
    y = jax.block_until_ready(odenet_forward(t_span, x_small, params))
    y_ref = odenet_reference(x_small, params)
    assert y.shape == (32, 3)
    assert jnp.allclose(y, y_ref, atol=1e-1, rtol=1e-1), "bf16 small-batch mismatch"

    # 2) Non-multiple batch: padding + even two-step parallel grid, exact f32 path.
    x_big = jax.random.normal(k_x2, (500, 3), dtype=jnp.float32)
    y32 = jax.block_until_ready(
        odenet_forward(t_span, x_big, params, compute_dtype=jnp.float32))
    y32_ref = odenet_reference(x_big, params)
    assert y32.shape == (500, 3)
    assert jnp.allclose(y32, y32_ref, atol=1e-4, rtol=1e-4), "f32 mismatch"

    # 3) Default bf16 path on the same batch (bf16 softplus on v6e/v7x, f32 elsewhere).
    yb = jax.block_until_ready(odenet_forward(t_span, x_big, params))
    assert yb.shape == (500, 3)
    assert jnp.allclose(yb, y32_ref, atol=1e-1, rtol=1e-1), "bf16 mismatch"

    print("KERNEL_OK")
</pallas_src>

<mosaic_0001>
module attributes {stable_mosaic.version = 11 : i64} {
  func.func @odenet_kernel(%arg0: i32, %arg1: memref<128x3xf32, #tpu.memory_space<vmem>>, %arg2: memref<64x6xbf16, #tpu.memory_space<vmem>>, %arg3: memref<64x1xf32, #tpu.memory_space<vmem>>, %arg4: memref<64x64xbf16, #tpu.memory_space<vmem>>, %arg5: memref<64x1xf32, #tpu.memory_space<vmem>>, %arg6: memref<64x3xbf16, #tpu.memory_space<vmem>>, %arg7: memref<1x3xf32, #tpu.memory_space<vmem>>, %arg8: memref<128x3xf32, #tpu.memory_space<vmem>>) attributes {dimension_semantics = [#tpu.dimension_semantics<parallel>], iteration_bounds = array<i64: 1>, scalar_prefetch = 0 : i64, scratch_operands = 0 : i64, tpu.core_type = #tpu.core_type<tc>, window_params = [{transform_indices = @transform_0, window_bounds = array<i64: 128, 3>}, {pipeline_mode = #tpu.pipeline_mode<synchronous>, transform_indices = @transform_1, window_bounds = array<i64: 64, 6>}, {pipeline_mode = #tpu.pipeline_mode<synchronous>, transform_indices = @transform_2, window_bounds = array<i64: 64, 1>}, {pipeline_mode = #tpu.pipeline_mode<synchronous>, transform_indices = @transform_3, window_bounds = array<i64: 64, 64>}, {pipeline_mode = #tpu.pipeline_mode<synchronous>, transform_indices = @transform_4, window_bounds = array<i64: 64, 1>}, {pipeline_mode = #tpu.pipeline_mode<synchronous>, transform_indices = @transform_5, window_bounds = array<i64: 64, 3>}, {pipeline_mode = #tpu.pipeline_mode<synchronous>, transform_indices = @transform_6, window_bounds = array<i64: 1, 3>}, {transform_indices = @transform_7, window_bounds = array<i64: 128, 3>}]} {
    %c0 = arith.constant 0 : index
    %c0_0 = arith.constant 0 : index
    %0 = vector.load %arg1[%c0, %c0_0] : memref<128x3xf32, #tpu.memory_space<vmem>>, vector<128x3xf32>
    %1 = vector.extract_strided_slice %0 {offsets = [0, 0], sizes = [128, 1], strides = [1, 1]} : vector<128x3xf32> to vector<128x1xf32>
    %2 = vector.extract_strided_slice %0 {offsets = [0, 1], sizes = [128, 1], strides = [1, 1]} : vector<128x3xf32> to vector<128x1xf32>
    %3 = vector.extract_strided_slice %0 {offsets = [0, 2], sizes = [128, 1], strides = [1, 1]} : vector<128x3xf32> to vector<128x1xf32>
    %4 = arith.truncf %0 : vector<128x3xf32> to vector<128x3xbf16>
    %5 = arith.mulf %1, %2 : vector<128x1xf32>
    %6 = arith.truncf %5 : vector<128x1xf32> to vector<128x1xbf16>
    %7 = arith.mulf %2, %3 : vector<128x1xf32>
    %8 = arith.truncf %7 : vector<128x1xf32> to vector<128x1xbf16>
    %9 = arith.mulf %1, %3 : vector<128x1xf32>
    %10 = arith.truncf %9 : vector<128x1xf32> to vector<128x1xbf16>
    %c0_1 = arith.constant 0 : index
    %c0_2 = arith.constant 0 : index
    %11 = vector.load %arg2[%c0_1, %c0_2] : memref<64x6xbf16, #tpu.memory_space<vmem>>, vector<64x6xbf16>
    %12 = vector.extract_strided_slice %11 {offsets = [0, 0], sizes = [64, 3], strides = [1, 1]} : vector<64x6xbf16> to vector<64x3xbf16>
    %cst = arith.constant dense<0.000000e+00> : vector<64x128xf32>
    %13 = tpu.matmul %12, %4, %cst {dimension_numbers = #tpu.dot_dimension_numbers<[1], [1], [0], [0], [0, 0, 1, 0], [], []>} : vector<64x3xbf16>, vector<128x3xbf16>, vector<64x128xf32> -> vector<64x128xf32>
    %14 = vector.extract_strided_slice %11 {offsets = [0, 3], sizes = [64, 1], strides = [1, 1]} : vector<64x6xbf16> to vector<64x1xbf16>
    %cst_3 = arith.constant dense<0.000000e+00> : vector<64x128xf32>
    %15 = tpu.matmul %14, %6, %cst_3 {dimension_numbers = #tpu.dot_dimension_numbers<[1], [1], [0], [0], [0, 0, 1, 0], [], []>} : vector<64x1xbf16>, vector<128x1xbf16>, vector<64x128xf32> -> vector<64x128xf32>
    %16 = arith.addf %13, %15 : vector<64x128xf32>
    %17 = vector.extract_strided_slice %11 {offsets = [0, 4], sizes = [64, 1], strides = [1, 1]} : vector<64x6xbf16> to vector<64x1xbf16>
    %cst_4 = arith.constant dense<0.000000e+00> : vector<64x128xf32>
    %18 = tpu.matmul %17, %8, %cst_4 {dimension_numbers = #tpu.dot_dimension_numbers<[1], [1], [0], [0], [0, 0, 1, 0], [], []>} : vector<64x1xbf16>, vector<128x1xbf16>, vector<64x128xf32> -> vector<64x128xf32>
    %19 = arith.addf %16, %18 : vector<64x128xf32>
    %20 = vector.extract_strided_slice %11 {offsets = [0, 5], sizes = [64, 1], strides = [1, 1]} : vector<64x6xbf16> to vector<64x1xbf16>
    %cst_5 = arith.constant dense<0.000000e+00> : vector<64x128xf32>
    %21 = tpu.matmul %20, %10, %cst_5 {dimension_numbers = #tpu.dot_dimension_numbers<[1], [1], [0], [0], [0, 0, 1, 0], [], []>} : vector<64x1xbf16>, vector<128x1xbf16>, vector<64x128xf32> -> vector<64x128xf32>
    %22 = arith.addf %19, %21 : vector<64x128xf32>
    %c0_6 = arith.constant 0 : index
    %c0_7 = arith.constant 0 : index
    %23 = vector.load %arg3[%c0_6, %c0_7] : memref<64x1xf32, #tpu.memory_space<vmem>>, vector<64x1xf32>
    %24 = vector.broadcast %23 : vector<64x1xf32> to vector<64x128xf32>
    %25 = arith.addf %22, %24 : vector<64x128xf32>
    %26 = arith.truncf %25 : vector<64x128xf32> to vector<64x128xbf16>
    %cst_8 = arith.constant 2.000000e+01 : bf16
    %27 = vector.broadcast %cst_8 : bf16 to vector<64x128xbf16>
    %28 = arith.cmpf ogt, %26, %27 : vector<64x128xbf16>
    %29 = math.exp %26 : vector<64x128xbf16>
    %cst_9 = arith.constant 1.000000e+00 : bf16
    %30 = vector.broadcast %cst_9 : bf16 to vector<64x128xbf16>
    %31 = arith.addf %30, %29 : vector<64x128xbf16>
    %32 = math.log %31 : vector<64x128xbf16>
    %33 = arith.select %28, %26, %32 : vector<64x128xi1>, vector<64x128xbf16>
    %c0_10 = arith.constant 0 : index
    %c0_11 = arith.constant 0 : index
    %34 = vector.load %arg4[%c0_10, %c0_11] : memref<64x64xbf16, #tpu.memory_space<vmem>>, vector<64x64xbf16>
    %cst_12 = arith.constant dense<0.000000e+00> : vector<64x128xf32>
    %35 = tpu.matmul %34, %33, %cst_12 {dimension_numbers = #tpu.dot_dimension_numbers<[1], [0], [0], [1], [0, 0, 1, 1], [], []>} : vector<64x64xbf16>, vector<64x128xbf16>, vector<64x128xf32> -> vector<64x128xf32>
    %c0_13 = arith.constant 0 : index
    %c0_14 = arith.constant 0 : index
    %36 = vector.load %arg5[%c0_13, %c0_14] : memref<64x1xf32, #tpu.memory_space<vmem>>, vector<64x1xf32>
    %37 = vector.broadcast %36 : vector<64x1xf32> to vector<64x128xf32>
    %38 = arith.addf %35, %37 : vector<64x128xf32>
    %39 = arith.truncf %38 : vector<64x128xf32> to vector<64x128xbf16>
    %cst_15 = arith.constant 2.000000e+01 : bf16
    %40 = vector.broadcast %cst_15 : bf16 to vector<64x128xbf16>
    %41 = arith.cmpf ogt, %39, %40 : vector<64x128xbf16>
    %42 = math.exp %39 : vector<64x128xbf16>
    %cst_16 = arith.constant 1.000000e+00 : bf16
    %43 = vector.broadcast %cst_16 : bf16 to vector<64x128xbf16>
    %44 = arith.addf %43, %42 : vector<64x128xbf16>
    %45 = math.log %44 : vector<64x128xbf16>
    %46 = arith.select %41, %39, %45 : vector<64x128xi1>, vector<64x128xbf16>
    %c0_17 = arith.constant 0 : index
    %c0_18 = arith.constant 0 : index
    %47 = vector.load %arg6[%c0_17, %c0_18] : memref<64x3xbf16, #tpu.memory_space<vmem>>, vector<64x3xbf16>
    %cst_19 = arith.constant dense<0.000000e+00> : vector<128x3xf32>
    %48 = tpu.matmul %46, %47, %cst_19 {dimension_numbers = #tpu.dot_dimension_numbers<[0], [0], [1], [1], [0, 1, 1, 1], [], []>} : vector<64x128xbf16>, vector<64x3xbf16>, vector<128x3xf32> -> vector<128x3xf32>
    %c0_20 = arith.constant 0 : index
    %c0_21 = arith.constant 0 : index
    %49 = vector.load %arg7[%c0_20, %c0_21] : memref<1x3xf32, #tpu.memory_space<vmem>>, vector<1x3xf32>
    %50 = vector.broadcast %49 : vector<1x3xf32> to vector<128x3xf32>
    %51 = arith.addf %48, %50 : vector<128x3xf32>
    %c0_22 = arith.constant 0 : index
    %c0_23 = arith.constant 0 : index
    %52 = vector.load %arg8[%c0_22, %c0_23] : memref<128x3xf32, #tpu.memory_space<vmem>>, vector<128x3xf32>
    tpu.vector_store %arg8[%c0_22, %c0_23], %51 {strides = array<i32>} : memref<128x3xf32, #tpu.memory_space<vmem>>, vector<128x3xf32>,
    return
  }
  func.func @transform_0(%arg0: i32) -> (i32, i32) {
    %c0_i32 = arith.constant 0 : i32
    %c0_i32_0 = arith.constant 0 : i32
    return %arg0, %c0_i32 : i32, i32
  }
  func.func @transform_1(%arg0: i32) -> (i32, i32) {
    %c0_i32 = arith.constant 0 : i32
    %c0_i32_0 = arith.constant 0 : i32
    %c0_i32_1 = arith.constant 0 : i32
    return %c0_i32, %c0_i32_0 : i32, i32
  }
  func.func @transform_2(%arg0: i32) -> (i32, i32) {
    %c0_i32 = arith.constant 0 : i32
    %c0_i32_0 = arith.constant 0 : i32
    %c0_i32_1 = arith.constant 0 : i32
    return %c0_i32, %c0_i32_0 : i32, i32
  }
  func.func @transform_3(%arg0: i32) -> (i32, i32) {
    %c0_i32 = arith.constant 0 : i32
    %c0_i32_0 = arith.constant 0 : i32
    %c0_i32_1 = arith.constant 0 : i32
    return %c0_i32, %c0_i32_0 : i32, i32
  }
  func.func @transform_4(%arg0: i32) -> (i32, i32) {
    %c0_i32 = arith.constant 0 : i32
    %c0_i32_0 = arith.constant 0 : i32
    %c0_i32_1 = arith.constant 0 : i32
    return %c0_i32, %c0_i32_0 : i32, i32
  }
  func.func @transform_5(%arg0: i32) -> (i32, i32) {
    %c0_i32 = arith.constant 0 : i32
    %c0_i32_0 = arith.constant 0 : i32
    %c0_i32_1 = arith.constant 0 : i32
    return %c0_i32, %c0_i32_0 : i32, i32
  }
  func.func @transform_6(%arg0: i32) -> (i32, i32) {
    %c0_i32 = arith.constant 0 : i32
    %c0_i32_0 = arith.constant 0 : i32
    %c0_i32_1 = arith.constant 0 : i32
    return %c0_i32, %c0_i32_0 : i32, i32
  }
  func.func @transform_7(%arg0: i32) -> (i32, i32) {
    %c0_i32 = arith.constant 0 : i32
    %c0_i32_0 = arith.constant 0 : i32
    return %arg0, %c0_i32 : i32, i32
  }
}

</mosaic_0001>

<llo_original>
// kernel: tpu_custom_call.1
$region0: #{tpu_custom_call.1}
  #allocation0 [shape = 'u32[]', space=smem, size = 0x4, offset = 0x4, fixed_abs, tag = 'smem constant byte address 0x4 - core index']
  #allocation1 [shape = 'u32[72,128]{1,0:T(1,128)}', space=vmem, size = 0x9000, scoped, tag = 'internal scratch']
  %s0 = inlined_call_operand.vmem [shape: f32[128,3], index: 0, kind: input, shape index: {}]
  %s1 = inlined_call_operand.vmem [shape: bf16[64,6], index: 1, kind: input, shape index: {}]
  %s2 = inlined_call_operand.vmem [shape: f32[64,1], index: 2, kind: input, shape index: {}]
  %s3 = inlined_call_operand.vmem [shape: bf16[64,64], index: 3, kind: input, shape index: {}]
  %s4 = inlined_call_operand.vmem [shape: f32[64,1], index: 4, kind: input, shape index: {}]
  %s5 = inlined_call_operand.vmem [shape: bf16[64,3], index: 5, kind: input, shape index: {}]
  %s6 = inlined_call_operand.vmem [shape: f32[1,3], index: 6, kind: input, shape index: {}]
  %s7 = inlined_call_operand.vmem [shape: f32[128,3], index: 7, kind: output, shape index: {}]
  %s8 = sld [smem:[#allocation0]]
  $region38: #{tpu_custom_call.1} parent=0
    _
  %s10 = ssub.s32 1, %s8
  %s11 = scalar_select 0, %s10, %s8
  // Predicated region
  $region2: #{tpu_custom_call.1} parent=0 // pred_check
    _
  $region3: #{tpu_custom_call.1} parent=0 // pred_check_branch
    %13 = sbr.rel (0) target = $region5
  $region4: #{tpu_custom_call.1} parent=0 // pred_region
    _
  $region5: #{tpu_custom_call.1} parent=0 // pred_fallthru
    _
  // Predicated region
  $region6: #{tpu_custom_call.1} parent=0 // pred_check
    _
  $region7: #{tpu_custom_call.1} parent=0 // pred_check_branch
    %15 = sbr.rel (0) target = $region9
  $region8: #{tpu_custom_call.1} parent=0 // pred_region
    _
  $region9: #{tpu_custom_call.1} parent=0 // pred_fallthru
    _
  // Predicated region
  $region10: #{tpu_custom_call.1} parent=0 // pred_check
    _
  $region11: #{tpu_custom_call.1} parent=0 // pred_check_branch
    %17 = sbr.rel (0) target = $region13
  $region12: #{tpu_custom_call.1} parent=0 // pred_region
    _
  $region13: #{tpu_custom_call.1} parent=0 // pred_fallthru
    _
  // Predicated region
  $region14: #{tpu_custom_call.1} parent=0 // pred_check
    _
  $region15: #{tpu_custom_call.1} parent=0 // pred_check_branch
    %19 = sbr.rel (0) target = $region17
  $region16: #{tpu_custom_call.1} parent=0 // pred_region
    _
  $region17: #{tpu_custom_call.1} parent=0 // pred_fallthru
    _
  // Predicated region
  $region18: #{tpu_custom_call.1} parent=0 // pred_check
    _
  $region19: #{tpu_custom_call.1} parent=0 // pred_check_branch
    %21 = sbr.rel (0) target = $region21
  $region20: #{tpu_custom_call.1} parent=0 // pred_region
    _
  $region21: #{tpu_custom_call.1} parent=0 // pred_fallthru
    _
  // Predicated region
  $region22: #{tpu_custom_call.1} parent=0 // pred_check
    _
  $region23: #{tpu_custom_call.1} parent=0 // pred_check_branch
    %23 = sbr.rel (0) target = $region25
  $region24: #{tpu_custom_call.1} parent=0 // pred_region
    _
  $region25: #{tpu_custom_call.1} parent=0 // pred_fallthru
    _
  // Predicated region
  $region26: #{tpu_custom_call.1} parent=0 // pred_check
    _
  $region27: #{tpu_custom_call.1} parent=0 // pred_check_branch
    %25 = sbr.rel (0) target = $region29
  $region28: #{tpu_custom_call.1} parent=0 // pred_region
    _
  $region29: #{tpu_custom_call.1} parent=0 // pred_fallthru
    _
  %v27 = vld [vmem:[%s0] sm:$0xff]
  %v28 = vld [vmem:[%s0 + $0x8] sm:$0xff]
  %v29 = vld [vmem:[%s0 + $0x10] sm:$0xff]
  %v30 = vld [vmem:[%s0 + $0x18] sm:$0xff]
  %v31 = vld [vmem:[%s0 + $0x20] sm:$0xff]
  %v32 = vld [vmem:[%s0 + $0x28] sm:$0xff]
  %v33 = vld [vmem:[%s0 + $0x30] sm:$0xff]
  %v34 = vld [vmem:[%s0 + $0x38] sm:$0xff]
  %v35 = vld [vmem:[%s0 + $0x40] sm:$0xff]
  %v36 = vld [vmem:[%s0 + $0x48] sm:$0xff]
  %v37 = vld [vmem:[%s0 + $0x50] sm:$0xff]
  %v38 = vld [vmem:[%s0 + $0x58] sm:$0xff]
  %v39 = vld [vmem:[%s0 + $0x60] sm:$0xff]
  %v40 = vld [vmem:[%s0 + $0x68] sm:$0xff]
  %v41 = vld [vmem:[%s0 + $0x70] sm:$0xff]
  %v42 = vld [vmem:[%s0 + $0x78] sm:$0xff]
  %v43 = vpack.c.bf16 %v28, %v27
  %v44 = vpack.c.bf16 %v30, %v29
  %v45 = vpack.c.bf16 %v32, %v31
  %v46 = vpack.c.bf16 %v34, %v33
  %v47 = vpack.c.bf16 %v36, %v35
  %v48 = vpack.c.bf16 %v38, %v37
  %v49 = vpack.c.bf16 %v40, %v39
  %v50 = vpack.c.bf16 %v42, %v41
  %67 = vrot.lane.b32.xlu0 %v27, 127
  %v68 = vpop.permute.xlu0 %67
  %69 = vrot.lane.b32.xlu0 %v28, 127
  %v70 = vpop.permute.xlu0 %69
  %71 = vrot.lane.b32.xlu0 %v29, 127
  %v72 = vpop.permute.xlu0 %71
  %73 = vrot.lane.b32.xlu0 %v30, 127
  %v74 = vpop.permute.xlu0 %73
  %75 = vrot.lane.b32.xlu0 %v31, 127
  %v76 = vpop.permute.xlu0 %75
  %77 = vrot.lane.b32.xlu0 %v32, 127
  %v78 = vpop.permute.xlu0 %77
  %79 = vrot.lane.b32.xlu0 %v33, 127
  %v80 = vpop.permute.xlu0 %79
  %81 = vrot.lane.b32.xlu0 %v34, 127
  %v82 = vpop.permute.xlu0 %81
  %83 = vrot.lane.b32.xlu0 %v35, 127
  %v84 = vpop.permute.xlu0 %83
  %85 = vrot.lane.b32.xlu0 %v36, 127
  %v86 = vpop.permute.xlu0 %85
  %87 = vrot.lane.b32.xlu0 %v37, 127
  %v88 = vpop.permute.xlu0 %87
  %89 = vrot.lane.b32.xlu0 %v38, 127
  %v90 = vpop.permute.xlu0 %89
  %91 = vrot.lane.b32.xlu0 %v39, 127
  %v92 = vpop.permute.xlu0 %91
  %93 = vrot.lane.b32.xlu0 %v40, 127
  %v94 = vpop.permute.xlu0 %93
  %95 = vrot.lane.b32.xlu0 %v41, 127
  %v96 = vpop.permute.xlu0 %95
  %97 = vrot.lane.b32.xlu0 %v42, 127
  %v98 = vpop.permute.xlu0 %97
  %v115 = vmul.f32 %v27, %v68
  %v116 = vmul.f32 %v28, %v70
  %v117 = vmul.f32 %v29, %v72
  %v118 = vmul.f32 %v30, %v74
  %v119 = vmul.f32 %v31, %v76
  %v120 = vmul.f32 %v32, %v78
  %v121 = vmul.f32 %v33, %v80
  %v122 = vmul.f32 %v34, %v82
  %v123 = vmul.f32 %v35, %v84
  %v124 = vmul.f32 %v36, %v86
  %v125 = vmul.f32 %v37, %v88
  %v126 = vmul.f32 %v38, %v90
  %v127 = vmul.f32 %v39, %v92
  %v128 = vmul.f32 %v40, %v94
  %v129 = vmul.f32 %v41, %v96
  %v130 = vmul.f32 %v42, %v98
  %v131 = vpack.c.bf16 %v116, %v115
  %v132 = vpack.c.bf16 %v118, %v117
  %v133 = vpack.c.bf16 %v120, %v119
  %v134 = vpack.c.bf16 %v122, %v121
  %v135 = vpack.c.bf16 %v124, %v123
  %v136 = vpack.c.bf16 %v126, %v125
  %v137 = vpack.c.bf16 %v128, %v127
  %v138 = vpack.c.bf16 %v130, %v129
  %139 = vrot.lane.b32.xlu0 %v27, 126
  %v140 = vpop.permute.xlu0 %139
  %141 = vrot.lane.b32.xlu0 %v28, 126
  %v142 = vpop.permute.xlu0 %141
  %143 = vrot.lane.b32.xlu0 %v29, 126
  %v144 = vpop.permute.xlu0 %143
  %145 = vrot.lane.b32.xlu0 %v30, 126
  %v146 = vpop.permute.xlu0 %145
  %147 = vrot.lane.b32.xlu0 %v31, 126
  %v148 = vpop.permute.xlu0 %147
  %149 = vrot.lane.b32.xlu0 %v32, 126
  %v150 = vpop.permute.xlu0 %149
  %151 = vrot.lane.b32.xlu0 %v33, 126
  %v152 = vpop.permute.xlu0 %151
  %153 = vrot.lane.b32.xlu0 %v34, 126
  %v154 = vpop.permute.xlu0 %153
  %155 = vrot.lane.b32.xlu0 %v35, 126
  %v156 = vpop.permute.xlu0 %155
  %157 = vrot.lane.b32.xlu0 %v36, 126
  %v158 = vpop.permute.xlu0 %157
  %159 = vrot.lane.b32.xlu0 %v37, 126
  %v160 = vpop.permute.xlu0 %159
  %161 = vrot.lane.b32.xlu0 %v38, 126
  %v162 = vpop.permute.xlu0 %161
  %163 = vrot.lane.b32.xlu0 %v39, 126
  %v164 = vpop.permute.xlu0 %163
  %165 = vrot.lane.b32.xlu0 %v40, 126
  %v166 = vpop.permute.xlu0 %165
  %167 = vrot.lane.b32.xlu0 %v41, 126
  %v168 = vpop.permute.xlu0 %167
  %169 = vrot.lane.b32.xlu0 %v42, 126
  %v170 = vpop.permute.xlu0 %169
  %v187 = vmul.f32 %v27, %v140
  %v188 = vmul.f32 %v28, %v142
  %v189 = vmul.f32 %v29, %v144
  %v190 = vmul.f32 %v30, %v146
  %v191 = vmul.f32 %v31, %v148
  %v192 = vmul.f32 %v32, %v150
  %v193 = vmul.f32 %v33, %v152
  %v194 = vmul.f32 %v34, %v154
  %v195 = vmul.f32 %v35, %v156
  %v196 = vmul.f32 %v36, %v158
  %v197 = vmul.f32 %v37, %v160
  %v198 = vmul.f32 %v38, %v162
  %v199 = vmul.f32 %v39, %v164
  %v200 = vmul.f32 %v40, %v166
  %v201 = vmul.f32 %v41, %v168
  %v202 = vmul.f32 %v42, %v170
  %v203 = vpack.c.bf16 %v188, %v187
  %v204 = vpack.c.bf16 %v190, %v189
  %v205 = vpack.c.bf16 %v192, %v191
  %v206 = vpack.c.bf16 %v194, %v193
  %v207 = vpack.c.bf16 %v196, %v195
  %v208 = vpack.c.bf16 %v198, %v197
  %v209 = vpack.c.bf16 %v200, %v199
  %v210 = vpack.c.bf16 %v202, %v201
  %v211 = vld [vmem:[%s1] sm:$0xf]
  %v212 = vld [vmem:[%s1 + $0x4] sm:$0xf]
  %v213 = vld [vmem:[%s1 + $0x8] sm:$0xf]
  %v214 = vld [vmem:[%s1 + $0xc] sm:$0xf]
  %v215 = vld [vmem:[%s1 + $0x10] sm:$0xf]
  %v216 = vld [vmem:[%s1 + $0x14] sm:$0xf]
  %v217 = vld [vmem:[%s1 + $0x18] sm:$0xf]
  %v218 = vld [vmem:[%s1 + $0x1c] sm:$0xf]
  %v227 = vunpack.c.l.b16 %v211
  %v228 = vunpack.c.l.b16 %v212
  %v229 = vunpack.c.l.b16 %v213
  %v230 = vunpack.c.l.b16 %v214
  %v231 = vunpack.c.l.b16 %v215
  %v232 = vunpack.c.l.b16 %v216
  %v233 = vunpack.c.l.b16 %v217
  %v234 = vunpack.c.l.b16 %v218
  %v235 = vpack.c.b16 %v228, %v227
  %v236 = vpack.c.b16 %v230, %v229
  %v237 = vpack.c.b16 %v232, %v231
  %v238 = vpack.c.b16 %v234, %v233
  %239 = vrot.lane.b32.xlu0 %v235, 125
  %v240 = vpop.permute.xlu0 %239
  %241 = vrot.lane.b32.xlu0 %v236, 125
  %v242 = vpop.permute.xlu0 %241
  %243 = vrot.lane.b32.xlu0 %v237, 125
  %v244 = vpop.permute.xlu0 %243
  %245 = vrot.lane.b32.xlu0 %v238, 125
  %v246 = vpop.permute.xlu0 %245
  %vm247 = vcmask 7168
  %v249 = vsel %vm247, %v240, 0
  %v252 = vsel %vm247, %v242, 0
  %v255 = vsel %vm247, %v244, 0
  %v258 = vsel %vm247, %v246, 0
  %v261 = vsel %vm247, %v131, 0
  %v264 = vsel %vm247, %v132, 0
  %v267 = vsel %vm247, %v133, 0
  %v270 = vsel %vm247, %v134, 0
  %v273 = vsel %vm247, %v135, 0
  %v276 = vsel %vm247, %v136, 0
  %v279 = vsel %vm247, %v137, 0
  %v282 = vsel %vm247, %v138, 0
  %284 = vmatpush.bf16.xpose.msra.mxu0 %v282
  %285 = vmatpush.bf16.xpose.msra.mxu0 %v279
  %286 = vmatpush.bf16.xpose.msra.mxu0 %v276
  %287 = vmatpush.bf16.xpose.msra.mxu0 %v273
  %288 = vmatpush.bf16.xpose.msra.mxu0 %v270
  %289 = vmatpush.bf16.xpose.msra.mxu0 %v267
  %290 = vmatpush.bf16.xpose.msra.mxu0 %v264
  %291 = vmatpush.bf16.xpose.msra.mxu0 %v261
  %292 = vmatmul.bf16.gmra.mxu0 %v249
  %v293 = vpop.f32.mrf.mxu0
  %v294 = vadd.f32 0.0, %v293
  %v295 = vpop.f32.mrf.mxu0
  %v296 = vadd.f32 0.0, %v295
  %297 = vmatmul.bf16.gmra.mxu0 %v252
  %v298 = vpop.f32.mrf.mxu0
  %v299 = vadd.f32 0.0, %v298
  %v300 = vpop.f32.mrf.mxu0
  %v301 = vadd.f32 0.0, %v300
  %302 = vmatmul.bf16.gmra.mxu0 %v255
  %v303 = vpop.f32.mrf.mxu0
  %v304 = vadd.f32 0.0, %v303
  %v305 = vpop.f32.mrf.mxu0
  %v306 = vadd.f32 0.0, %v305
  %307 = vmatmul.bf16.gmra.mxu0 %v258
  %v308 = vpop.f32.mrf.mxu0
  %v309 = vadd.f32 0.0, %v308
  %v310 = vpop.f32.mrf.mxu0
  %v311 = vadd.f32 0.0, %v310
  %312 = vdwg.mxu0
  %vm313 = vcmask 23552
  %v315 = vsel %vm313, %v235, 0
  %v318 = vsel %vm313, %v236, 0
  %v321 = vsel %vm313, %v237, 0
  %v324 = vsel %vm313, %v238, 0
  %v327 = vsel %vm313, %v43, 0
  %v330 = vsel %vm313, %v44, 0
  %v333 = vsel %vm313, %v45, 0
  %v336 = vsel %vm313, %v46, 0
  %v339 = vsel %vm313, %v47, 0
  %v342 = vsel %vm313, %v48, 0
  %v345 = vsel %vm313, %v49, 0
  %v348 = vsel %vm313, %v50, 0
  %350 = vmatpush.bf16.xpose.msra.mxu0 %v348
  %351 = vmatpush.bf16.xpose.msra.mxu0 %v345
  %352 = vmatpush.bf16.xpose.msra.mxu0 %v342
  %353 = vmatpush.bf16.xpose.msra.mxu0 %v339
  %354 = vmatpush.bf16.xpose.msra.mxu0 %v336
  %355 = vmatpush.bf16.xpose.msra.mxu0 %v333
  %356 = vmatpush.bf16.xpose.msra.mxu0 %v330
  %357 = vmatpush.bf16.xpose.msra.mxu0 %v327
  %358 = vmatmul.bf16.gmra.mxu0 %v315
  %v359 = vpop.f32.mrf.mxu0
  %v360 = vadd.f32 %v294, %v359
  %v361 = vpop.f32.mrf.mxu0
  %v362 = vadd.f32 %v296, %v361
  %363 = vmatmul.bf16.gmra.mxu0 %v318
  %v364 = vpop.f32.mrf.mxu0
  %v365 = vadd.f32 %v299, %v364
  %v366 = vpop.f32.mrf.mxu0
  %v367 = vadd.f32 %v301, %v366
  %368 = vmatmul.bf16.gmra.mxu0 %v321
  %v369 = vpop.f32.mrf.mxu0
  %v370 = vadd.f32 %v304, %v369
  %v371 = vpop.f32.mrf.mxu0
  %v372 = vadd.f32 %v306, %v371
  %373 = vmatmul.bf16.gmra.mxu0 %v324
  %v374 = vpop.f32.mrf.mxu0
  %v375 = vadd.f32 %v309, %v374
  %v376 = vpop.f32.mrf.mxu0
  %v377 = vadd.f32 %v311, %v376
  %378 = vdwg.mxu0
  %379 = vrot.lane.b32.xlu0 %v235, 124
  %v380 = vpop.permute.xlu0 %379
  %381 = vrot.lane.b32.xlu0 %v236, 124
  %v382 = vpop.permute.xlu0 %381
  %383 = vrot.lane.b32.xlu0 %v237, 124
  %v384 = vpop.permute.xlu0 %383
  %385 = vrot.lane.b32.xlu0 %v238, 124
  %v386 = vpop.permute.xlu0 %385
  %395 = vrot.lane.b32.xlu0 %v131, 127
  %v396 = vpop.permute.xlu0 %395
  %397 = vrot.lane.b32.xlu0 %v132, 127
  %v398 = vpop.permute.xlu0 %397
  %399 = vrot.lane.b32.xlu0 %v133, 127
  %v400 = vpop.permute.xlu0 %399
  %401 = vrot.lane.b32.xlu0 %v134, 127
  %v402 = vpop.permute.xlu0 %401
  %403 = vrot.lane.b32.xlu0 %v135, 127
  %v404 = vpop.permute.xlu0 %403
  %405 = vrot.lane.b32.xlu0 %v136, 127
  %v406 = vpop.permute.xlu0 %405
  %407 = vrot.lane.b32.xlu0 %v137, 127
  %v408 = vpop.permute.xlu0 %407
  %409 = vrot.lane.b32.xlu0 %v138, 127
  %v410 = vpop.permute.xlu0 %409
  %v412 = vsel %vm247, %v380, 0
  %v415 = vsel %vm247, %v382, 0
  %v418 = vsel %vm247, %v384, 0
  %v421 = vsel %vm247, %v386, 0
  %v424 = vsel %vm247, %v396, 0
  %v427 = vsel %vm247, %v398, 0
  %v430 = vsel %vm247, %v400, 0
  %v433 = vsel %vm247, %v402, 0
  %v436 = vsel %vm247, %v404, 0
  %v439 = vsel %vm247, %v406, 0
  %v442 = vsel %vm247, %v408, 0
  %v445 = vsel %vm247, %v410, 0
  %447 = vmatpush.bf16.xpose.msra.mxu0 %v445
  %448 = vmatpush.bf16.xpose.msra.mxu0 %v442
  %449 = vmatpush.bf16.xpose.msra.mxu0 %v439
  %450 = vmatpush.bf16.xpose.msra.mxu0 %v436
  %451 = vmatpush.bf16.xpose.msra.mxu0 %v433
  %452 = vmatpush.bf16.xpose.msra.mxu0 %v430
  %453 = vmatpush.bf16.xpose.msra.mxu0 %v427
  %454 = vmatpush.bf16.xpose.msra.mxu0 %v424
  %455 = vmatmul.bf16.gmra.mxu0 %v412
  %v456 = vpop.f32.mrf.mxu0
  %v457 = vadd.f32 0.0, %v456
  %v458 = vpop.f32.mrf.mxu0
  %v459 = vadd.f32 0.0, %v458
  %460 = vmatmul.bf16.gmra.mxu0 %v415
  %v461 = vpop.f32.mrf.mxu0
  %v462 = vadd.f32 0.0, %v461
  %v463 = vpop.f32.mrf.mxu0
  %v464 = vadd.f32 0.0, %v463
  %465 = vmatmul.bf16.gmra.mxu0 %v418
  %v466 = vpop.f32.mrf.mxu0
  %v467 = vadd.f32 0.0, %v466
  %v468 = vpop.f32.mrf.mxu0
  %v469 = vadd.f32 0.0, %v468
  %470 = vmatmul.bf16.gmra.mxu0 %v421
  %v471 = vpop.f32.mrf.mxu0
  %v472 = vadd.f32 0.0, %v471
  %v473 = vpop.f32.mrf.mxu0
  %v474 = vadd.f32 0.0, %v473
  %475 = vdwg.mxu0
  %v476 = vadd.f32 %v360, %v457
  %v477 = vadd.f32 %v362, %v459
  %v478 = vadd.f32 %v365, %v462
  %v479 = vadd.f32 %v367, %v464
  %v480 = vadd.f32 %v370, %v467
  %v481 = vadd.f32 %v372, %v469
  %v482 = vadd.f32 %v375, %v472
  %v483 = vadd.f32 %v377, %v474
  %484 = vrot.lane.b32.xlu0 %v235, 123
  %v485 = vpop.permute.xlu0 %484
  %486 = vrot.lane.b32.xlu0 %v236, 123
  %v487 = vpop.permute.xlu0 %486
  %488 = vrot.lane.b32.xlu0 %v237, 123
  %v489 = vpop.permute.xlu0 %488
  %490 = vrot.lane.b32.xlu0 %v238, 123
  %v491 = vpop.permute.xlu0 %490
  %v493 = vsel %vm247, %v485, 0
  %v496 = vsel %vm247, %v487, 0
  %v499 = vsel %vm247, %v489, 0
  %v502 = vsel %vm247, %v491, 0
  %v505 = vsel %vm247, %v203, 0
  %v508 = vsel %vm247, %v204, 0
  %v511 = vsel %vm247, %v205, 0
  %v514 = vsel %vm247, %v206, 0
  %v517 = vsel %vm247, %v207, 0
  %v520 = vsel %vm247, %v208, 0
  %v523 = vsel %vm247, %v209, 0
  %v526 = vsel %vm247, %v210, 0
  %528 = vmatpush.bf16.xpose.msra.mxu0 %v526
  %529 = vmatpush.bf16.xpose.msra.mxu0 %v523
  %530 = vmatpush.bf16.xpose.msra.mxu0 %v520
  %531 = vmatpush.bf16.xpose.msra.mxu0 %v517
  %532 = vmatpush.bf16.xpose.msra.mxu0 %v514
  %533 = vmatpush.bf16.xpose.msra.mxu0 %v511
  %534 = vmatpush.bf16.xpose.msra.mxu0 %v508
  %535 = vmatpush.bf16.xpose.msra.mxu0 %v505
  %536 = vmatmul.bf16.gmra.mxu0 %v493
  %v537 = vpop.f32.mrf.mxu0
  %v538 = vadd.f32 0.0, %v537
  %v539 = vpop.f32.mrf.mxu0
  %v540 = vadd.f32 0.0, %v539
  %541 = vmatmul.bf16.gmra.mxu0 %v496
  %v542 = vpop.f32.mrf.mxu0
  %v543 = vadd.f32 0.0, %v542
  %v544 = vpop.f32.mrf.mxu0
  %v545 = vadd.f32 0.0, %v544
  %546 = vmatmul.bf16.gmra.mxu0 %v499
  %v547 = vpop.f32.mrf.mxu0
  %v548 = vadd.f32 0.0, %v547
  %v549 = vpop.f32.mrf.mxu0
  %v550 = vadd.f32 0.0, %v549
  %551 = vmatmul.bf16.gmra.mxu0 %v502
  %v552 = vpop.f32.mrf.mxu0
  %v553 = vadd.f32 0.0, %v552
  %v554 = vpop.f32.mrf.mxu0
  %v555 = vadd.f32 0.0, %v554
  %556 = vdwg.mxu0
  %v557 = vadd.f32 %v476, %v538
  %v558 = vadd.f32 %v477, %v540
  %v559 = vadd.f32 %v478, %v543
  %v560 = vadd.f32 %v479, %v545
  %v561 = vadd.f32 %v480, %v548
  %v562 = vadd.f32 %v481, %v550
  %v563 = vadd.f32 %v482, %v553
  %v564 = vadd.f32 %v483, %v555
  %v565 = vld [vmem:[%s2] sm:$0xff]
  %v566 = vld [vmem:[%s2 + $0x8] sm:$0xff]
  %v567 = vld [vmem:[%s2 + $0x10] sm:$0xff]
  %v568 = vld [vmem:[%s2 + $0x18] sm:$0xff]
  %v569 = vld [vmem:[%s2 + $0x20] sm:$0xff]
  %v570 = vld [vmem:[%s2 + $0x28] sm:$0xff]
  %v571 = vld [vmem:[%s2 + $0x30] sm:$0xff]
  %v572 = vld [vmem:[%s2 + $0x38] sm:$0xff]
  %574 = vset.pattern.permute.xlu0 0
  %575 = vperm.xlu0 %574, %v565
  %v576 = vpop.permute.xlu0 %575
  %579 = vset.pattern.permute.xlu0 0
  %580 = vperm.xlu0 %579, %v566
  %v581 = vpop.permute.xlu0 %580
  %584 = vset.pattern.permute.xlu0 0
  %585 = vperm.xlu0 %584, %v567
  %v586 = vpop.permute.xlu0 %585
  %589 = vset.pattern.permute.xlu0 0
  %590 = vperm.xlu0 %589, %v568
  %v591 = vpop.permute.xlu0 %590
  %594 = vset.pattern.permute.xlu0 0
  %595 = vperm.xlu0 %594, %v569
  %v596 = vpop.permute.xlu0 %595
  %599 = vset.pattern.permute.xlu0 0
  %600 = vperm.xlu0 %599, %v570
  %v601 = vpop.permute.xlu0 %600
  %604 = vset.pattern.permute.xlu0 0
  %605 = vperm.xlu0 %604, %v571
  %v606 = vpop.permute.xlu0 %605
  %609 = vset.pattern.permute.xlu0 0
  %610 = vperm.xlu0 %609, %v572
  %v611 = vpop.permute.xlu0 %610
  %v613 = vadd.f32 %v557, %v576
  %v614 = vadd.f32 %v558, %v581
  %v615 = vadd.f32 %v559, %v586
  %v616 = vadd.f32 %v560, %v591
  %v617 = vadd.f32 %v561, %v596
  %v618 = vadd.f32 %v562, %v601
  %v619 = vadd.f32 %v563, %v606
  %v620 = vadd.f32 %v564, %v611
  %v621 = vpack.c.bf16 %v613, %v613
  %v622 = vpack.c.bf16 %v614, %v614
  %v623 = vpack.c.bf16 %v615, %v615
  %v624 = vpack.c.bf16 %v616, %v616
  %v625 = vpack.c.bf16 %v617, %v617
  %v626 = vpack.c.bf16 %v618, %v618
  %v627 = vpack.c.bf16 %v619, %v619
  %v628 = vpack.c.bf16 %v620, %v620
  %v629 = vunpack.c.l.bf16 %v621
  %v630 = vunpack.c.l.bf16 %v622
  %v631 = vunpack.c.l.bf16 %v623
  %v632 = vunpack.c.l.bf16 %v624
  %v633 = vunpack.c.l.bf16 %v625
  %v634 = vunpack.c.l.bf16 %v626
  %v635 = vunpack.c.l.bf16 %v627
  %v636 = vunpack.c.l.bf16 %v628
  %vm637 = vcmp.gt.f32.partialorder %v629, 20.0
  %vm638 = vcmp.gt.f32.partialorder %v630, 20.0
  %vm639 = vcmp.gt.f32.partialorder %v631, 20.0
  %vm640 = vcmp.gt.f32.partialorder %v632, 20.0
  %vm641 = vcmp.gt.f32.partialorder %v633, 20.0
  %vm642 = vcmp.gt.f32.partialorder %v634, 20.0
  %vm643 = vcmp.gt.f32.partialorder %v635, 20.0
  %vm644 = vcmp.gt.f32.partialorder %v636, 20.0
  %v645 = vmul.f32 %v629, 1.442695
  %v646 = vpow.pop %v645
  %v647 = vmul.f32 %v630, 1.442695
  %v648 = vpow.pop %v647
  %v649 = vmul.f32 %v631, 1.442695
  %v650 = vpow.pop %v649
  %v651 = vmul.f32 %v632, 1.442695
  %v652 = vpow.pop %v651
  %v653 = vmul.f32 %v633, 1.442695
  %v654 = vpow.pop %v653
  %v655 = vmul.f32 %v634, 1.442695
  %v656 = vpow.pop %v655
  %v657 = vmul.f32 %v635, 1.442695
  %v658 = vpow.pop %v657
  %v659 = vmul.f32 %v636, 1.442695
  %v660 = vpow.pop %v659
  %v661 = vpack.c.bf16 %v646, %v646
  %v662 = vpack.c.bf16 %v648, %v648
  %v663 = vpack.c.bf16 %v650, %v650
  %v664 = vpack.c.bf16 %v652, %v652
  %v665 = vpack.c.bf16 %v654, %v654
  %v666 = vpack.c.bf16 %v656, %v656
  %v667 = vpack.c.bf16 %v658, %v658
  %v668 = vpack.c.bf16 %v660, %v660
  %v669 = vunpack.c.l.bf16 %v661
  %v670 = vunpack.c.l.bf16 %v662
  %v671 = vunpack.c.l.bf16 %v663
  %v672 = vunpack.c.l.bf16 %v664
  %v673 = vunpack.c.l.bf16 %v665
  %v674 = vunpack.c.l.bf16 %v666
  %v675 = vunpack.c.l.bf16 %v667
  %v676 = vunpack.c.l.bf16 %v668
  %v677 = vadd.f32 %v669, 1.0
  %v678 = vadd.f32 %v670, 1.0
  %v679 = vadd.f32 %v671, 1.0
  %v680 = vadd.f32 %v672, 1.0
  %v681 = vadd.f32 %v673, 1.0
  %v682 = vadd.f32 %v674, 1.0
  %v683 = vadd.f32 %v675, 1.0
  %v684 = vadd.f32 %v676, 1.0
  %v685 = vpack.c.bf16 %v677, %v677
  %v686 = vpack.c.bf16 %v678, %v678
  %v687 = vpack.c.bf16 %v679, %v679
  %v688 = vpack.c.bf16 %v680, %v680
  %v689 = vpack.c.bf16 %v681, %v681
  %v690 = vpack.c.bf16 %v682, %v682
  %v691 = vpack.c.bf16 %v683, %v683
  %v692 = vpack.c.bf16 %v684, %v684
  %v693 = vunpack.c.l.bf16 %v685
  %v694 = vunpack.c.l.bf16 %v686
  %v695 = vunpack.c.l.bf16 %v687
  %v696 = vunpack.c.l.bf16 %v688
  %v697 = vunpack.c.l.bf16 %v689
  %v698 = vunpack.c.l.bf16 %v690
  %v699 = vunpack.c.l.bf16 %v691
  %v700 = vunpack.c.l.bf16 %v692
  %v701 = vlog2.pop %v693
  %v702 = vmul.f32 %v701, 0.6931472
  %v703 = vlog2.pop %v694
  %v704 = vmul.f32 %v703, 0.6931472
  %v705 = vlog2.pop %v695
  %v706 = vmul.f32 %v705, 0.6931472
  %v707 = vlog2.pop %v696
  %v708 = vmul.f32 %v707, 0.6931472
  %v709 = vlog2.pop %v697
  %v710 = vmul.f32 %v709, 0.6931472
  %v711 = vlog2.pop %v698
  %v712 = vmul.f32 %v711, 0.6931472
  %v713 = vlog2.pop %v699
  %v714 = vmul.f32 %v713, 0.6931472
  %v715 = vlog2.pop %v700
  %v716 = vmul.f32 %v715, 0.6931472
  %v717 = vpack.c.bf16 %v702, %v702
  %v718 = vpack.c.bf16 %v704, %v704
  %v719 = vpack.c.bf16 %v706, %v706
  %v720 = vpack.c.bf16 %v708, %v708
  %v721 = vpack.c.bf16 %v710, %v710
  %v722 = vpack.c.bf16 %v712, %v712
  %v723 = vpack.c.bf16 %v714, %v714
  %v724 = vpack.c.bf16 %v716, %v716
  %vm725 = vmpackc.low %vm637, %vm637
  %vm726 = vmpackc.low %vm638, %vm638
  %vm727 = vmpackc.low %vm639, %vm639
  %vm728 = vmpackc.low %vm640, %vm640
  %vm729 = vmpackc.low %vm641, %vm641
  %vm730 = vmpackc.low %vm642, %vm642
  %vm731 = vmpackc.low %vm643, %vm643
  %vm732 = vmpackc.low %vm644, %vm644
  %v733 = vsel %vm725, %v621, %v717
  %v734 = vsel %vm726, %v622, %v718
  %v735 = vsel %vm727, %v623, %v719
  %v736 = vsel %vm728, %v624, %v720
  %v737 = vsel %vm729, %v625, %v721
  %v738 = vsel %vm730, %v626, %v722
  %v739 = vsel %vm731, %v627, %v723
  %v740 = vsel %vm732, %v628, %v724
  %v741 = vld [vmem:[%s3] sm:$0xf]
  %v742 = vld [vmem:[%s3 + $0x4] sm:$0xf]
  %v743 = vld [vmem:[%s3 + $0x8] sm:$0xf]
  %v744 = vld [vmem:[%s3 + $0xc] sm:$0xf]
  %v745 = vld [vmem:[%s3 + $0x10] sm:$0xf]
  %v746 = vld [vmem:[%s3 + $0x14] sm:$0xf]
  %v747 = vld [vmem:[%s3 + $0x18] sm:$0xf]
  %v748 = vld [vmem:[%s3 + $0x1c] sm:$0xf]
  %v749 = vld [vmem:[%s4] sm:$0xff]
  %v750 = vld [vmem:[%s4 + $0x8] sm:$0xff]
  %v751 = vld [vmem:[%s4 + $0x10] sm:$0xff]
  %v752 = vld [vmem:[%s4 + $0x18] sm:$0xff]
  %v753 = vld [vmem:[%s4 + $0x20] sm:$0xff]
  %v754 = vld [vmem:[%s4 + $0x28] sm:$0xff]
  %v755 = vld [vmem:[%s4 + $0x30] sm:$0xff]
  %v756 = vld [vmem:[%s4 + $0x38] sm:$0xff]
  %758 = vset.pattern.permute.xlu0 0
  %759 = vperm.xlu0 %758, %v749
  %v760 = vpop.permute.xlu0 %759
  %763 = vset.pattern.permute.xlu0 0
  %764 = vperm.xlu0 %763, %v750
  %v765 = vpop.permute.xlu0 %764
  %768 = vset.pattern.permute.xlu0 0
  %769 = vperm.xlu0 %768, %v751
  %v770 = vpop.permute.xlu0 %769
  %773 = vset.pattern.permute.xlu0 0
  %774 = vperm.xlu0 %773, %v752
  %v775 = vpop.permute.xlu0 %774
  %778 = vset.pattern.permute.xlu0 0
  %779 = vperm.xlu0 %778, %v753
  %v780 = vpop.permute.xlu0 %779
  %783 = vset.pattern.permute.xlu0 0
  %784 = vperm.xlu0 %783, %v754
  %v785 = vpop.permute.xlu0 %784
  %788 = vset.pattern.permute.xlu0 0
  %789 = vperm.xlu0 %788, %v755
  %v790 = vpop.permute.xlu0 %789
  %793 = vset.pattern.permute.xlu0 0
  %794 = vperm.xlu0 %793, %v756
  %v795 = vpop.permute.xlu0 %794
  %v805 = vunpack.c.l.b16 %v741
  %v806 = vunpack.c.l.b16 %v742
  %v807 = vunpack.c.l.b16 %v743
  %v808 = vunpack.c.l.b16 %v744
  %v809 = vunpack.c.l.b16 %v745
  %v810 = vunpack.c.l.b16 %v746
  %v811 = vunpack.c.l.b16 %v747
  %v812 = vunpack.c.l.b16 %v748
  %v813 = vpack.c.b16 %v806, %v805
  %v814 = vpack.c.b16 %v808, %v807
  %v815 = vpack.c.b16 %v810, %v809
  %v816 = vpack.c.b16 %v812, %v811
  %v825 = vunpack.c.l.b16 %v733
  %v826 = vunpack.c.l.b16 %v734
  %v827 = vunpack.c.l.b16 %v735
  %v828 = vunpack.c.l.b16 %v736
  %v829 = vunpack.c.l.b16 %v737
  %v830 = vunpack.c.l.b16 %v738
  %v831 = vunpack.c.l.b16 %v739
  %v832 = vunpack.c.l.b16 %v740
  %v833 = vpack.c.b16 %v826, %v825
  %v834 = vpack.c.b16 %v828, %v827
  %v835 = vpack.c.b16 %v830, %v829
  %v836 = vpack.c.b16 %v832, %v831
  %vm841 = vcmask 523264
  %v843 = vsel %vm841, %v813, 0
  %v846 = vsel %vm841, %v814, 0
  %v849 = vsel %vm841, %v815, 0
  %v852 = vsel %vm841, %v816, 0
  %854 = vmatpush.bf16.msra.mxu0 0
  %855 = vmatpush.bf16.msra.mxu0 0
  %856 = vmatpush.bf16.msra.mxu0 0
  %857 = vmatpush.bf16.msra.mxu0 0
  %858 = vmatpush.bf16.msra.mxu0 %v836
  %859 = vmatpush.bf16.msra.mxu0 %v835
  %860 = vmatpush.bf16.msra.mxu0 %v834
  %861 = vmatpush.bf16.msra.mxu0 %v833
  %862 = vmatmul.bf16.gmra.mxu0 %v843
  %v863 = vpop.f32.mrf.mxu0
  %v864 = vadd.f32 %v760, %v863
  %v865 = vpop.f32.mrf.mxu0
  %v866 = vadd.f32 %v765, %v865
  %867 = vmatmul.bf16.gmra.mxu0 %v846
  %v868 = vpop.f32.mrf.mxu0
  %v869 = vadd.f32 %v770, %v868
  %v870 = vpop.f32.mrf.mxu0
  %v871 = vadd.f32 %v775, %v870
  %872 = vmatmul.bf16.gmra.mxu0 %v849
  %v873 = vpop.f32.mrf.mxu0
  %v874 = vadd.f32 %v780, %v873
  %v875 = vpop.f32.mrf.mxu0
  %v876 = vadd.f32 %v785, %v875
  %877 = vmatmul.bf16.gmra.mxu0 %v852
  %v878 = vpop.f32.mrf.mxu0
  %v879 = vadd.f32 %v790, %v878
  %v880 = vpop.f32.mrf.mxu0
  %v881 = vadd.f32 %v795, %v880
  %882 = vdwg.mxu0
  %v883 = vpack.c.bf16 %v864, %v864
  %v884 = vpack.c.bf16 %v866, %v866
  %v885 = vpack.c.bf16 %v869, %v869
  %v886 = vpack.c.bf16 %v871, %v871
  %v887 = vpack.c.bf16 %v874, %v874
  %v888 = vpack.c.bf16 %v876, %v876
  %v889 = vpack.c.bf16 %v879, %v879
  %v890 = vpack.c.bf16 %v881, %v881
  %v891 = vunpack.c.l.bf16 %v883
  %v892 = vunpack.c.l.bf16 %v884
  %v893 = vunpack.c.l.bf16 %v885
  %v894 = vunpack.c.l.bf16 %v886
  %v895 = vunpack.c.l.bf16 %v887
  %v896 = vunpack.c.l.bf16 %v888
  %v897 = vunpack.c.l.bf16 %v889
  %v898 = vunpack.c.l.bf16 %v890
  %vm899 = vcmp.gt.f32.partialorder %v891, 20.0
  %vm900 = vcmp.gt.f32.partialorder %v892, 20.0
  %vm901 = vcmp.gt.f32.partialorder %v893, 20.0
  %vm902 = vcmp.gt.f32.partialorder %v894, 20.0
  %vm903 = vcmp.gt.f32.partialorder %v895, 20.0
  %vm904 = vcmp.gt.f32.partialorder %v896, 20.0
  %vm905 = vcmp.gt.f32.partialorder %v897, 20.0
  %vm906 = vcmp.gt.f32.partialorder %v898, 20.0
  %v907 = vmul.f32 %v891, 1.442695
  %v908 = vpow.pop %v907
  %v909 = vmul.f32 %v892, 1.442695
  %v910 = vpow.pop %v909
  %v911 = vmul.f32 %v893, 1.442695
  %v912 = vpow.pop %v911
  %v913 = vmul.f32 %v894, 1.442695
  %v914 = vpow.pop %v913
  %v915 = vmul.f32 %v895, 1.442695
  %v916 = vpow.pop %v915
  %v917 = vmul.f32 %v896, 1.442695
  %v918 = vpow.pop %v917
  %v919 = vmul.f32 %v897, 1.442695
  %v920 = vpow.pop %v919
  %v921 = vmul.f32 %v898, 1.442695
  %v922 = vpow.pop %v921
  %v923 = vpack.c.bf16 %v908, %v908
  %v924 = vpack.c.bf16 %v910, %v910
  %v925 = vpack.c.bf16 %v912, %v912
  %v926 = vpack.c.bf16 %v914, %v914
  %v927 = vpack.c.bf16 %v916, %v916
  %v928 = vpack.c.bf16 %v918, %v918
  %v929 = vpack.c.bf16 %v920, %v920
  %v930 = vpack.c.bf16 %v922, %v922
  %v931 = vunpack.c.l.bf16 %v923
  %v932 = vunpack.c.l.bf16 %v924
  %v933 = vunpack.c.l.bf16 %v925
  %v934 = vunpack.c.l.bf16 %v926
  %v935 = vunpack.c.l.bf16 %v927
  %v936 = vunpack.c.l.bf16 %v928
  %v937 = vunpack.c.l.bf16 %v929
  %v938 = vunpack.c.l.bf16 %v930
  %v939 = vadd.f32 %v931, 1.0
  %v940 = vadd.f32 %v932, 1.0
  %v941 = vadd.f32 %v933, 1.0
  %v942 = vadd.f32 %v934, 1.0
  %v943 = vadd.f32 %v935, 1.0
  %v944 = vadd.f32 %v936, 1.0
  %v945 = vadd.f32 %v937, 1.0
  %v946 = vadd.f32 %v938, 1.0
  %v947 = vpack.c.bf16 %v939, %v939
  %v948 = vpack.c.bf16 %v940, %v940
  %v949 = vpack.c.bf16 %v941, %v941
  %v950 = vpack.c.bf16 %v942, %v942
  %v951 = vpack.c.bf16 %v943, %v943
  %v952 = vpack.c.bf16 %v944, %v944
  %v953 = vpack.c.bf16 %v945, %v945
  %v954 = vpack.c.bf16 %v946, %v946
  %v955 = vunpack.c.l.bf16 %v947
  %v956 = vunpack.c.l.bf16 %v948
  %v957 = vunpack.c.l.bf16 %v949
  %v958 = vunpack.c.l.bf16 %v950
  %v959 = vunpack.c.l.bf16 %v951
  %v960 = vunpack.c.l.bf16 %v952
  %v961 = vunpack.c.l.bf16 %v953
  %v962 = vunpack.c.l.bf16 %v954
  %v963 = vlog2.pop %v955
  %v964 = vmul.f32 %v963, 0.6931472
  %v965 = vlog2.pop %v956
  %v966 = vmul.f32 %v965, 0.6931472
  %v967 = vlog2.pop %v957
  %v968 = vmul.f32 %v967, 0.6931472
  %v969 = vlog2.pop %v958
  %v970 = vmul.f32 %v969, 0.6931472
  %v971 = vlog2.pop %v959
  %v972 = vmul.f32 %v971, 0.6931472
  %v973 = vlog2.pop %v960
  %v974 = vmul.f32 %v973, 0.6931472
  %v975 = vlog2.pop %v961
  %v976 = vmul.f32 %v975, 0.6931472
  %v977 = vlog2.pop %v962
  %v978 = vmul.f32 %v977, 0.6931472
  %v979 = vpack.c.bf16 %v964, %v964
  %v980 = vpack.c.bf16 %v966, %v966
  %v981 = vpack.c.bf16 %v968, %v968
  %v982 = vpack.c.bf16 %v970, %v970
  %v983 = vpack.c.bf16 %v972, %v972
  %v984 = vpack.c.bf16 %v974, %v974
  %v985 = vpack.c.bf16 %v976, %v976
  %v986 = vpack.c.bf16 %v978, %v978
  %vm987 = vmpackc.low %vm899, %vm899
  %vm988 = vmpackc.low %vm900, %vm900
  %vm989 = vmpackc.low %vm901, %vm901
  %vm990 = vmpackc.low %vm902, %vm902
  %vm991 = vmpackc.low %vm903, %vm903
  %vm992 = vmpackc.low %vm904, %vm904
  %vm993 = vmpackc.low %vm905, %vm905
  %vm994 = vmpackc.low %vm906, %vm906
  %v995 = vsel %vm987, %v883, %v979
  %v996 = vsel %vm988, %v884, %v980
  %v997 = vsel %vm989, %v885, %v981
  %v998 = vsel %vm990, %v886, %v982
  %v999 = vsel %vm991, %v887, %v983
  %v1000 = vsel %vm992, %v888, %v984
  %v1001 = vsel %vm993, %v889, %v985
  %v1002 = vsel %vm994, %v890, %v986
  %v1003 = vld [vmem:[%s5] sm:$0xf]
  %v1004 = vld [vmem:[%s5 + $0x4] sm:$0xf]
  %v1005 = vld [vmem:[%s5 + $0x8] sm:$0xf]
  %v1006 = vld [vmem:[%s5 + $0xc] sm:$0xf]
  %v1007 = vld [vmem:[%s5 + $0x10] sm:$0xf]
  %v1008 = vld [vmem:[%s5 + $0x14] sm:$0xf]
  %v1009 = vld [vmem:[%s5 + $0x18] sm:$0xf]
  %v1010 = vld [vmem:[%s5 + $0x1c] sm:$0xf]
  %v1011 = vld [vmem:[%s6] sm:$0x1]
  %v1013 = vperm.slane %v1011, 0
  %v1023 = vunpack.c.l.b16 %v995
  %v1024 = vunpack.c.l.b16 %v996
  %v1025 = vunpack.c.l.b16 %v997
  %v1026 = vunpack.c.l.b16 %v998
  %v1027 = vunpack.c.l.b16 %v999
  %v1028 = vunpack.c.l.b16 %v1000
  %v1029 = vunpack.c.l.b16 %v1001
  %v1030 = vunpack.c.l.b16 %v1002
  %v1031 = vpack.c.b16 %v1024, %v1023
  %v1032 = vpack.c.b16 %v1026, %v1025
  %v1033 = vpack.c.b16 %v1028, %v1027
  %v1034 = vpack.c.b16 %v1030, %v1029
  %1039 = vxpose.xlu0.c.b16.start [1/8] %v1031, 128
  %1040 = vxpose.xlu0.c.b16.cont [2/8] %v1032, 128
  %1041 = vxpose.xlu0.c.b16.cont [3/8] %v1033, 128
  %1042 = vxpose.xlu0.c.b16.cont [4/8] %v1034, 128
  %1043 = vxpose.xlu0.c.b16.cont [5/8] 0, 128
  %1044 = vxpose.xlu0.c.b16.cont [6/8] 0, 128
  %1045 = vxpose.xlu0.c.b16.cont [7/8] 0, 128
  %1046 = vxpose.xlu0.c.b16.end [8/8] 0, 128
  %v1047 = vpop.trf.xlu0
  %v1048 = vpop.trf.xlu0
  %v1049 = vpop.trf.xlu0
  %v1050 = vpop.trf.xlu0
  %v1051 = vpop.trf.xlu0
  %v1052 = vpop.trf.xlu0
  %v1053 = vpop.trf.xlu0
  %v1054 = vpop.trf.xlu0
  %v1063 = vunpack.c.l.b16 %v1003
  %v1064 = vunpack.c.l.b16 %v1004
  %v1065 = vunpack.c.l.b16 %v1005
  %v1066 = vunpack.c.l.b16 %v1006
  %v1067 = vunpack.c.l.b16 %v1007
  %v1068 = vunpack.c.l.b16 %v1008
  %v1069 = vunpack.c.l.b16 %v1009
  %v1070 = vunpack.c.l.b16 %v1010
  %v1071 = vpack.c.b16 %v1064, %v1063
  %v1072 = vpack.c.b16 %v1066, %v1065
  %v1073 = vpack.c.b16 %v1068, %v1067
  %v1074 = vpack.c.b16 %v1070, %v1069
  %v1080 = vsel %vm841, %v1047, 0
  %v1083 = vsel %vm841, %v1048, 0
  %v1086 = vsel %vm841, %v1049, 0
  %v1089 = vsel %vm841, %v1050, 0
  %v1092 = vsel %vm841, %v1051, 0
  %v1095 = vsel %vm841, %v1052, 0
  %v1098 = vsel %vm841, %v1053, 0
  %v1101 = vsel %vm841, %v1054, 0
  %1103 = vmatpush.bf16.msra.mxu0 0
  %1104 = vmatpush.bf16.msra.mxu0 0
  %1105 = vmatpush.bf16.msra.mxu0 0
  %1106 = vmatpush.bf16.msra.mxu0 0
  %1107 = vmatpush.bf16.msra.mxu0 %v1074
  %1108 = vmatpush.bf16.msra.mxu0 %v1073
  %1109 = vmatpush.bf16.msra.mxu0 %v1072
  %1110 = vmatpush.bf16.msra.mxu0 %v1071
  %1111 = vmatmul.bf16.gmra.mxu0 %v1080
  %v1112 = vpop.f32.mrf.mxu0
  %v1113 = vadd.f32 %v1013, %v1112
  %v1114 = vpop.f32.mrf.mxu0
  %v1115 = vadd.f32 %v1013, %v1114
  %1116 = vmatmul.bf16.gmra.mxu0 %v1083
  %v1117 = vpop.f32.mrf.mxu0
  %v1118 = vadd.f32 %v1013, %v1117
  %v1119 = vpop.f32.mrf.mxu0
  %v1120 = vadd.f32 %v1013, %v1119
  %1121 = vmatmul.bf16.gmra.mxu0 %v1086
  %v1122 = vpop.f32.mrf.mxu0
  %v1123 = vadd.f32 %v1013, %v1122
  %v1124 = vpop.f32.mrf.mxu0
  %v1125 = vadd.f32 %v1013, %v1124
  %1126 = vmatmul.bf16.gmra.mxu0 %v1089
  %v1127 = vpop.f32.mrf.mxu0
  %v1128 = vadd.f32 %v1013, %v1127
  %v1129 = vpop.f32.mrf.mxu0
  %v1130 = vadd.f32 %v1013, %v1129
  %1131 = vmatmul.bf16.gmra.mxu0 %v1092
  %v1132 = vpop.f32.mrf.mxu0
  %v1133 = vadd.f32 %v1013, %v1132
  %v1134 = vpop.f32.mrf.mxu0
  %v1135 = vadd.f32 %v1013, %v1134
  %1136 = vmatmul.bf16.gmra.mxu0 %v1095
  %v1137 = vpop.f32.mrf.mxu0
  %v1138 = vadd.f32 %v1013, %v1137
  %v1139 = vpop.f32.mrf.mxu0
  %v1140 = vadd.f32 %v1013, %v1139
  %1141 = vmatmul.bf16.gmra.mxu0 %v1098
  %v1142 = vpop.f32.mrf.mxu0
  %v1143 = vadd.f32 %v1013, %v1142
  %v1144 = vpop.f32.mrf.mxu0
  %v1145 = vadd.f32 %v1013, %v1144
  %1146 = vmatmul.bf16.gmra.mxu0 %v1101
  %v1147 = vpop.f32.mrf.mxu0
  %v1148 = vadd.f32 %v1013, %v1147
  %v1149 = vpop.f32.mrf.mxu0
  %v1150 = vadd.f32 %v1013, %v1149
  %1151 = vdwg.mxu0
  %1152 = vst.msk [vmem:[%s7] sm:$0xff] %vm313, %v1113
  %1153 = vst.msk [vmem:[%s7 + $0x8] sm:$0xff] %vm313, %v1115
  %1154 = vst.msk [vmem:[%s7 + $0x10] sm:$0xff] %vm313, %v1118
  %1155 = vst.msk [vmem:[%s7 + $0x18] sm:$0xff] %vm313, %v1120
  %1156 = vst.msk [vmem:[%s7 + $0x20] sm:$0xff] %vm313, %v1123
  %1157 = vst.msk [vmem:[%s7 + $0x28] sm:$0xff] %vm313, %v1125
  %1158 = vst.msk [vmem:[%s7 + $0x30] sm:$0xff] %vm313, %v1128
  %1159 = vst.msk [vmem:[%s7 + $0x38] sm:$0xff] %vm313, %v1130
  %1160 = vst.msk [vmem:[%s7 + $0x40] sm:$0xff] %vm313, %v1133
  %1161 = vst.msk [vmem:[%s7 + $0x48] sm:$0xff] %vm313, %v1135
  %1162 = vst.msk [vmem:[%s7 + $0x50] sm:$0xff] %vm313, %v1138
  %1163 = vst.msk [vmem:[%s7 + $0x58] sm:$0xff] %vm313, %v1140
  %1164 = vst.msk [vmem:[%s7 + $0x60] sm:$0xff] %vm313, %v1143
  %1165 = vst.msk [vmem:[%s7 + $0x68] sm:$0xff] %vm313, %v1145
  %1166 = vst.msk [vmem:[%s7 + $0x70] sm:$0xff] %vm313, %v1148
  %1167 = vst.msk [vmem:[%s7 + $0x78] sm:$0xff] %vm313, %v1150
  // Predicated region
  $region30: #{tpu_custom_call.1} parent=0 // pred_check
    _
  $region31: #{tpu_custom_call.1} parent=0 // pred_check_branch
    %1169 = sbr.rel (0) target = $region33
  $region32: #{tpu_custom_call.1} parent=0 // pred_region
    _
  $region33: #{tpu_custom_call.1} parent=0 // pred_fallthru
    _
  // Predicated region
  $region34: #{tpu_custom_call.1} parent=0 // pred_check
    _
  $region35: #{tpu_custom_call.1} parent=0 // pred_check_branch
    %1171 = sbr.rel (0) target = $region37
  $region36: #{tpu_custom_call.1} parent=0 // pred_region
    _
  $region37: #{tpu_custom_call.1} parent=0 // pred_fallthru
    _

</llo_original>
